<compile_context>
chip_gen: v6e
topology: v6e:2x2x1
jax: 0.10.0
libtpu: 0.0.40
codegen_flags: <defaults>
</compile_context>

<pallas_src>
import functools

import jax
import jax.numpy as jnp
from jax import lax
from jax.experimental import pallas as pl
from jax.experimental.pallas import tpu as pltpu

TOP_N = 5
_LANE = 128
_INT32_MAX = 2**31 - 1
_S_TILE_MAX = 512          # tile the query-seq axis above this length
_MIN_GRID_STEPS = 4        # keep the pipeline (and v7x's 2 TCs) fed
_EXACT_VALUE_C = 256       # above this C, re-extract exact winner distances


def _round_up(x, m):
    return ((x + m - 1) // m) * m


def _cdiv(a, b):
    return (a + b - 1) // b


def _vmem_budget():
    # Hardware-derived VMEM budget: ~70% of physical (v5e/v6e: ~90 MiB of 128 MiB,
    # v7x: ~45 MiB of 64 MiB). Falls back to a conservative 64 MiB if the query fails.
    cap = None
    try:
        cap = getattr(pltpu.get_tpu_info(), "vmem_capacity_bytes", None)
    except Exception:
        cap = None
    if not cap:
        cap = 64 * 1024 * 1024
    return int(0.70 * cap)


# ----------------------------- in-kernel helpers -----------------------------

def _project(q, w, b):
    # q: (G, S, D), w: (D, E), b: (1, E) -> (G, S, E).
    # Collapse (G, S) so the MXU sees one (G*S, D) @ (D, E) matmul per grid step.
    G, S, D = q.shape
    E = w.shape[1]
    p = jnp.dot(q.reshape(G * S, D), w, preferred_element_type=jnp.float32) + b
    return p.reshape(G, S, E)


def _sq_dist(qp, aug, embed_dim, compute_dtype):
    # qp: (G, S, D) f32; aug: (G, D+1, C) — rows [0,D) are context^T (lane-major),
    # row D is the precomputed |ctx|^2. ||a-b||^2 = |a|^2 + |b|^2 - 2 a.b; the cross
    # term is one batched MXU matmul against the pre-transposed context.
    ctx_t = aug[:, :embed_dim, :]                                      # (G, D, C)
    ctx_sq = aug[:, embed_dim:embed_dim + 1, :].astype(jnp.float32)    # (G, 1, C)
    q_sq = jnp.sum(qp * qp, axis=-1, keepdims=True)                    # (G, S, 1)
    a = qp.astype(compute_dtype) if compute_dtype is not None else qp
    cross = jnp.einsum('gsd,gdc->gsc', a, ctx_t,
                       preferred_element_type=jnp.float32)             # (G, S, C)
    return jnp.maximum(q_sq + ctx_sq - 2.0 * cross, 0.0)


def _topk_pack(d, top_n, out_lanes, sqrt_values, exact_values):
    # d: (G, S, C) non-negative f32 -> single lane-dense int32 slab (G, S, out_lanes):
    # lanes [0, top_n) hold the f32 bit patterns of the top-n smallest distances,
    # lanes [top_n, 2*top_n) hold their column indices, remaining lanes are zero.
    #
    # Value+index are packed into one int32 key (for d >= 0 the f32 bit pattern is
    # monotone): zero the low ceil(log2(C)) mantissa bits, OR in the column index.
    # One int-min lane reduction then yields both the (truncated) min distance and its
    # first-occurrence index. For large C the truncation gets coarse, so exact winner
    # values are re-extracted with a masked reduce (exact_values=True).
    G, S, C = d.shape
    cbits = max(1, (C - 1).bit_length())
    idx_mask = (1 << cbits) - 1
    val_mask = -(1 << cbits)                                           # ...1110000 (two's complement)
    col = lax.broadcasted_iota(jnp.int32, (G, S, C), 2)
    key = (pltpu.bitcast(d, jnp.int32) & val_mask) | col
    lane = lax.broadcasted_iota(jnp.int32, (G, S, out_lanes), 2)
    packed = jnp.zeros((G, S, out_lanes), jnp.int32)
    for k in range(top_n):
        kmin = jnp.min(key, axis=-1, keepdims=True)                    # one int-min reduce
        if exact_values:
            v = jnp.sum(jnp.where(key == kmin, d, 0.0), axis=-1, keepdims=True)
        else:
            v = pltpu.bitcast(kmin & val_mask, jnp.float32)
        if sqrt_values:                      # sqrt deferred to the top_n winners only
            v = jnp.sqrt(v)
        packed = jnp.where(lane == k, pltpu.bitcast(v, jnp.int32), packed)
        packed = jnp.where(lane == top_n + k, kmin & idx_mask, packed)
        if k + 1 < top_n:
            key = jnp.where(key == kmin, _INT32_MAX, key)              # retire the winner
    return packed


# --------------------------------- kernels -----------------------------------

def _explore_kernel(q_ref, caug_ref, w_ref, b_ref, out_ref,
                    *, top_n, embed_dim, compute_dtype, exact_values):
    qp = _project(q_ref[...], w_ref[...], b_ref[...])                  # (G, TS, D)
    dsq = _sq_dist(qp, caug_ref[...], embed_dim, compute_dtype)        # (G, TS, C)
    # top-k on squared distances (monotone); sqrt applied only to the winners.
    out_ref[...] = _topk_pack(dsq, top_n, out_ref.shape[-1],
                              sqrt_values=True, exact_values=exact_values)


def _explore_mem_kernel(q_ref, caug_ref, maug_ref, w_ref, b_ref, out_ref,
                        *, top_n, embed_dim, compute_dtype, exact_values):
    # w/b are the fused [query-projection | gate] weights padded to a 128-lane multiple.
    # TODO(synk): if the v6e bundle shows materialized relayout copies for these
    #             sub-128-lane slices, keep qp at Dp lanes and pad the context rows.
    proj = _project(q_ref[...], w_ref[...], b_ref[...])                # (G, TS, Dp)
    qp = proj[:, :, :embed_dim]                                        # (G, TS, D)
    gate = jax.nn.sigmoid(proj[:, :, embed_dim:embed_dim + 1])         # (G, TS, 1)
    d_ctx = jnp.sqrt(_sq_dist(qp, caug_ref[...], embed_dim, compute_dtype))
    d_mem = jnp.sqrt(_sq_dist(qp, maug_ref[...], embed_dim, compute_dtype))
    d = d_ctx * gate + d_mem * (1.0 - gate)
    out_ref[...] = _topk_pack(d, top_n, out_ref.shape[-1],
                              sqrt_values=False, exact_values=exact_values)


# --------------------------------- wrapper -----------------------------------

def exploratory_forward(query, context, memory=None, *, params, top_n=TOP_N,
                        compute_dtype=None):
    assert 2 * top_n <= _LANE
    B, S, D = query.shape
    C = context.shape[1]
    use_mem = memory is not None

    # ---- XLA-side layout prep: lane-major rows + squared-norm row in one slab ----
    def make_aug(x):                                                   # (B, N, D) -> (B, D+1, N)
        xt = jnp.swapaxes(x, 1, 2)
        xsq = jnp.sum(x * x, axis=-1)[:, None, :]
        aug = jnp.concatenate([xt, xsq], axis=1)
        if compute_dtype is not None:
            aug = aug.astype(compute_dtype)                            # halves the dominant DMA stream
        return aug

    ctx_aug = make_aug(context)

    if use_mem:
        memory = memory.reshape(memory.shape[0], -1, memory.shape[-1])
        K = memory.shape[1]
        assert K == C, "gated memory blend requires context_seq_len == memory_len"
        mem_aug = make_aug(memory)
        # Fuse gate into the projection: column D of w_comb holds the gate weights.
        Dp = _round_up(D + 1, _LANE)
        w = jnp.pad(jnp.concatenate([params["wq_t"], params["wg"]], axis=1),
                    ((0, 0), (0, Dp - D - 1)))                         # (D, Dp)
        b = jnp.pad(jnp.concatenate([params["bq"], params["bg"]], axis=1),
                    ((0, 0), (0, Dp - D - 1)))                         # (1, Dp)
    else:
        K = 0
        Dp = D
        w, b = params["wq_t"], params["bq"]

    # ---- S tiling (second parallel axis + bounded intermediates for long S) ----
    if S > _S_TILE_MAX:
        TS = _S_TILE_MAX
        S_pad = _round_up(S, TS)
    else:
        TS, S_pad = S, S
    ns = S_pad // TS

    # ---- batch blocking against a hardware-derived VMEM budget ----
    budget = _vmem_budget()
    in_bytes = jnp.dtype(compute_dtype).itemsize if compute_dtype is not None else 4
    io_pb = (4 * TS * D                                                # query block
             + in_bytes * (D + 1) * (C + (K if use_mem else 0))        # ctx (+ mem) slabs
             + 4 * TS * _LANE)                                         # packed output slab
    fixed_io = 2 * 4 * (D * Dp + Dp)                                   # weights (double-buffered)
    if use_mem:
        interm_pb = 4 * TS * (Dp + D + 4 * C + 3 * K + 2 * _LANE)
    else:
        interm_pb = 4 * TS * (D + 5 * C + 2 * _LANE)
    min_b_steps = max(1, _cdiv(_MIN_GRID_STEPS, ns))                   # keep >= ~4 total grid steps
    gb_steps_cap = max(1, B // min_b_steps) if B >= min_b_steps else 1
    gb_vmem_cap = max(1, (budget - fixed_io) // (2 * io_pb + interm_pb))
    GB = max(1, min(B, gb_steps_cap, gb_vmem_cap))
    nb = _cdiv(B, GB)
    B_pad = nb * GB

    # ---- cdiv-based blocking: pad B (and S) instead of requiring divisibility ----
    if B_pad != B or S_pad != S:
        query = jnp.pad(query, ((0, B_pad - B), (0, S_pad - S), (0, 0)))
    if B_pad != B:
        ctx_aug = jnp.pad(ctx_aug, ((0, B_pad - B), (0, 0), (0, 0)))
        if use_mem:
            mem_aug = jnp.pad(mem_aug, ((0, B_pad - B), (0, 0), (0, 0)))

    exact_values = C > _EXACT_VALUE_C

    q_spec = pl.BlockSpec((GB, TS, D), lambda bi, si: (bi, si, 0))
    c_spec = pl.BlockSpec((GB, D + 1, C), lambda bi, si: (bi, 0, 0))
    w_spec = pl.BlockSpec((D, Dp), lambda bi, si: (0, 0))
    b_spec = pl.BlockSpec((1, Dp), lambda bi, si: (0, 0))
    out_spec = pl.BlockSpec((GB, TS, _LANE), lambda bi, si: (bi, si, 0))
    out_shape = jax.ShapeDtypeStruct((B_pad, S_pad, _LANE), jnp.int32)

    if use_mem:
        kernel = functools.partial(_explore_mem_kernel, top_n=top_n, embed_dim=D,
                                   compute_dtype=compute_dtype, exact_values=exact_values)
        in_specs = [q_spec, c_spec,
                    pl.BlockSpec((GB, D + 1, K), lambda bi, si: (bi, 0, 0)),
                    w_spec, b_spec]
        args = (query, ctx_aug, mem_aug, w, b)
    else:
        kernel = functools.partial(_explore_kernel, top_n=top_n, embed_dim=D,
                                   compute_dtype=compute_dtype, exact_values=exact_values)
        in_specs = [q_spec, c_spec, w_spec, b_spec]
        args = (query, ctx_aug, w, b)

    packed = pl.pallas_call(
        kernel,
        out_shape=out_shape,
        grid_spec=pltpu.PrefetchScalarGridSpec(
            num_scalar_prefetch=0,
            grid=(nb, ns),
            in_specs=in_specs,
            out_specs=out_spec),
        compiler_params=pltpu.CompilerParams(
            dimension_semantics=("parallel", "parallel"),
            vmem_limit_bytes=budget),
    )(*args)

    # Unpack the single lane-dense int32 slab: f32 distance bits then indices.
    vals = lax.bitcast_convert_type(packed[:B, :S, :top_n], jnp.float32)
    idxs = packed[:B, :S, top_n:2 * top_n]
    return vals, idxs


# ----------------------------- params & reference -----------------------------

def init_params(key, embed_dim):
    k1, k2, k3, k4 = jax.random.split(key, 4)
    lim = 1.0 / jnp.sqrt(embed_dim)
    wq = jax.random.uniform(k1, (embed_dim, embed_dim), jnp.float32, -lim, lim)  # Linear (out, in)
    bq = jax.random.uniform(k2, (1, embed_dim), jnp.float32, -lim, lim)
    wg = jax.random.uniform(k3, (embed_dim, 1), jnp.float32, -lim, lim)          # gating weight^T
    bg = jax.random.uniform(k4, (1, 1), jnp.float32, -lim, lim)
    return {"wq_t": wq.T, "bq": bq, "wg": wg, "bg": bg}


def reference_forward(query, context, memory, params, top_n):
    qp = query @ params["wq_t"] + params["bq"][0]

    def cdist(a, b):
        sq = (jnp.sum(a * a, -1)[..., :, None] + jnp.sum(b * b, -1)[..., None, :]
              - 2.0 * jnp.einsum("bsd,bcd->bsc", a, b))
        return jnp.sqrt(jnp.maximum(sq, 0.0))

    d = cdist(qp, context)
    if memory is not None:
        d_mem = cdist(qp, memory)
        gate = jax.nn.sigmoid(query @ params["wg"] + params["bg"][0])
        d = d * gate + d_mem * (1.0 - gate)
    neg_vals, idx = lax.top_k(-d, top_n)
    return -neg_vals, idx


# ----------------------------------- main -------------------------------------

if __name__ == "__main__":
    B, S, C, K, D = 2, 8, 16, 16, 32   # batch, query seq, context seq, memory len, embed dim
    key = jax.random.PRNGKey(0)
    kq, kc, km, kp = jax.random.split(key, 4)
    query = jax.random.normal(kq, (B, S, D), jnp.float32)
    context = jax.random.normal(kc, (B, C, D), jnp.float32)
    memory = jax.random.normal(km, (B, K, D), jnp.float32)
    params = init_params(kp, D)

    vals, idxs = exploratory_forward(query, context, memory, params=params, top_n=TOP_N)
    jax.block_until_ready((vals, idxs))

    ref_vals, ref_idx = reference_forward(query, context, memory, params, TOP_N)
    assert vals.shape == (B, S, TOP_N) and idxs.shape == (B, S, TOP_N)
    assert idxs.dtype == jnp.int32
    assert jnp.allclose(vals, ref_vals, rtol=1e-4, atol=1e-4), "top-n distance mismatch"

    # Also exercise the memory=None (no gating) path.
    vals2, idxs2 = exploratory_forward(query, context, None, params=params, top_n=TOP_N)
    jax.block_until_ready((vals2, idxs2))
    ref_vals2, _ = reference_forward(query, context, None, params, TOP_N)
    assert jnp.allclose(vals2, ref_vals2, rtol=1e-4, atol=1e-4), "top-n distance mismatch (no memory)"

    print("KERNEL_OK")
</pallas_src>

<mosaic_0001>
module attributes {stable_mosaic.version = 11 : i64} {
  func.func @_explore_mem_kernel(%arg0: i32, %arg1: i32, %arg2: memref<1x8x32xf32, #tpu.memory_space<vmem>>, %arg3: memref<1x33x16xf32, #tpu.memory_space<vmem>>, %arg4: memref<1x33x16xf32, #tpu.memory_space<vmem>>, %arg5: memref<32x128xf32, #tpu.memory_space<vmem>>, %arg6: memref<1x128xf32, #tpu.memory_space<vmem>>, %arg7: memref<1x8x128xi32, #tpu.memory_space<vmem>>) attributes {dimension_semantics = [#tpu.dimension_semantics<parallel>, #tpu.dimension_semantics<parallel>], iteration_bounds = array<i64: 2, 1>, scalar_prefetch = 0 : i64, scratch_operands = 0 : i64, tpu.core_type = #tpu.core_type<tc>, window_params = [{transform_indices = @transform_0, window_bounds = array<i64: 1, 8, 32>}, {transform_indices = @transform_1, window_bounds = array<i64: 1, 33, 16>}, {transform_indices = @transform_2, window_bounds = array<i64: 1, 33, 16>}, {pipeline_mode = #tpu.pipeline_mode<synchronous>, transform_indices = @transform_3, window_bounds = array<i64: 32, 128>}, {pipeline_mode = #tpu.pipeline_mode<synchronous>, transform_indices = @transform_4, window_bounds = array<i64: 1, 128>}, {transform_indices = @transform_5, window_bounds = array<i64: 1, 8, 128>}]} {
    %c0 = arith.constant 0 : index
    %c0_0 = arith.constant 0 : index
    %c0_1 = arith.constant 0 : index
    %0 = vector.load %arg2[%c0, %c0_0, %c0_1] : memref<1x8x32xf32, #tpu.memory_space<vmem>>, vector<1x8x32xf32>
    %c0_2 = arith.constant 0 : index
    %c0_3 = arith.constant 0 : index
    %1 = vector.load %arg5[%c0_2, %c0_3] : memref<32x128xf32, #tpu.memory_space<vmem>>, vector<32x128xf32>
    %c0_4 = arith.constant 0 : index
    %c0_5 = arith.constant 0 : index
    %2 = vector.load %arg6[%c0_4, %c0_5] : memref<1x128xf32, #tpu.memory_space<vmem>>, vector<1x128xf32>
    %3 = vector.shape_cast %0 : vector<1x8x32xf32> to vector<8x32xf32>
    %cst = arith.constant dense<0.000000e+00> : vector<8x128xf32>
    %4 = tpu.matmul %3, %1, %cst {dimension_numbers = #tpu.dot_dimension_numbers<[1], [0], [0], [1], [0, 0, 1, 1], [], []>} : vector<8x32xf32>, vector<32x128xf32>, vector<8x128xf32> -> vector<8x128xf32>
    %5 = vector.broadcast %2 : vector<1x128xf32> to vector<8x128xf32>
    %6 = arith.addf %4, %5 : vector<8x128xf32>
    %7 = vector.shape_cast %6 : vector<8x128xf32> to vector<1x8x128xf32>
    %8 = vector.extract_strided_slice %7 {offsets = [0, 0, 0], sizes = [1, 8, 32], strides = [1, 1, 1]} : vector<1x8x128xf32> to vector<1x8x32xf32>
    %9 = vector.extract_strided_slice %7 {offsets = [0, 0, 32], sizes = [1, 8, 1], strides = [1, 1, 1]} : vector<1x8x128xf32> to vector<1x8x1xf32>
    %10 = arith.negf %9 : vector<1x8x1xf32>
    %11 = math.exp %10 : vector<1x8x1xf32>
    %cst_6 = arith.constant 1.000000e+00 : f32
    %12 = vector.broadcast %cst_6 : f32 to vector<1x8x1xf32>
    %13 = arith.addf %12, %11 : vector<1x8x1xf32>
    %14 = arith.divf %12, %13 : vector<1x8x1xf32>
    %c0_7 = arith.constant 0 : index
    %c0_8 = arith.constant 0 : index
    %c0_9 = arith.constant 0 : index
    %15 = vector.load %arg3[%c0_7, %c0_8, %c0_9] : memref<1x33x16xf32, #tpu.memory_space<vmem>>, vector<1x33x16xf32>
    %16 = vector.extract_strided_slice %15 {offsets = [0, 0, 0], sizes = [1, 32, 16], strides = [1, 1, 1]} : vector<1x33x16xf32> to vector<1x32x16xf32>
    %17 = vector.extract_strided_slice %15 {offsets = [0, 32, 0], sizes = [1, 1, 16], strides = [1, 1, 1]} : vector<1x33x16xf32> to vector<1x1x16xf32>
    %18 = arith.mulf %8, %8 : vector<1x8x32xf32>
    %cst_10 = arith.constant dense<0.000000e+00> : vector<1x8xf32>
    %19 = vector.multi_reduction <add>, %18, %cst_10 [2] : vector<1x8x32xf32> to vector<1x8xf32>
    %20 = vector.shape_cast %19 : vector<1x8xf32> to vector<1x8x1xf32>
    "tpu.trace_start"() <{level = 10 : i32, message = "gsd,gdc->gsc"}> : () -> ()
    %cst_11 = arith.constant dense<0.000000e+00> : vector<1x8x16xf32>
    %21 = tpu.matmul %8, %16, %cst_11 {dimension_numbers = #tpu.dot_dimension_numbers<[2], [1], [1], [2], [0, 0, 0, 1, 1, 2], [0], [0]>} : vector<1x8x32xf32>, vector<1x32x16xf32>, vector<1x8x16xf32> -> vector<1x8x16xf32>
    "tpu.trace_stop"() : () -> ()
    %22 = vector.broadcast %20 : vector<1x8x1xf32> to vector<1x8x16xf32>
    %23 = vector.broadcast %17 : vector<1x1x16xf32> to vector<1x8x16xf32>
    %24 = arith.addf %22, %23 : vector<1x8x16xf32>
    %cst_12 = arith.constant 2.000000e+00 : f32
    %25 = vector.broadcast %cst_12 : f32 to vector<1x8x16xf32>
    %26 = arith.mulf %25, %21 : vector<1x8x16xf32>
    %27 = arith.subf %24, %26 : vector<1x8x16xf32>
    %cst_13 = arith.constant 0.000000e+00 : f32
    %28 = vector.broadcast %cst_13 : f32 to vector<1x8x16xf32>
    %29 = arith.maximumf %27, %28 : vector<1x8x16xf32>
    %30 = math.sqrt %29 : vector<1x8x16xf32>
    %c0_14 = arith.constant 0 : index
    %c0_15 = arith.constant 0 : index
    %c0_16 = arith.constant 0 : index
    %31 = vector.load %arg4[%c0_14, %c0_15, %c0_16] : memref<1x33x16xf32, #tpu.memory_space<vmem>>, vector<1x33x16xf32>
    %32 = vector.extract_strided_slice %31 {offsets = [0, 0, 0], sizes = [1, 32, 16], strides = [1, 1, 1]} : vector<1x33x16xf32> to vector<1x32x16xf32>
    %33 = vector.extract_strided_slice %31 {offsets = [0, 32, 0], sizes = [1, 1, 16], strides = [1, 1, 1]} : vector<1x33x16xf32> to vector<1x1x16xf32>
    %34 = arith.mulf %8, %8 : vector<1x8x32xf32>
    %cst_17 = arith.constant dense<0.000000e+00> : vector<1x8xf32>
    %35 = vector.multi_reduction <add>, %34, %cst_17 [2] : vector<1x8x32xf32> to vector<1x8xf32>
    %36 = vector.shape_cast %35 : vector<1x8xf32> to vector<1x8x1xf32>
    "tpu.trace_start"() <{level = 10 : i32, message = "gsd,gdc->gsc"}> : () -> ()
    %cst_18 = arith.constant dense<0.000000e+00> : vector<1x8x16xf32>
    %37 = tpu.matmul %8, %32, %cst_18 {dimension_numbers = #tpu.dot_dimension_numbers<[2], [1], [1], [2], [0, 0, 0, 1, 1, 2], [0], [0]>} : vector<1x8x32xf32>, vector<1x32x16xf32>, vector<1x8x16xf32> -> vector<1x8x16xf32>
    "tpu.trace_stop"() : () -> ()
    %38 = vector.broadcast %36 : vector<1x8x1xf32> to vector<1x8x16xf32>
    %39 = vector.broadcast %33 : vector<1x1x16xf32> to vector<1x8x16xf32>
    %40 = arith.addf %38, %39 : vector<1x8x16xf32>
    %cst_19 = arith.constant 2.000000e+00 : f32
    %41 = vector.broadcast %cst_19 : f32 to vector<1x8x16xf32>
    %42 = arith.mulf %41, %37 : vector<1x8x16xf32>
    %43 = arith.subf %40, %42 : vector<1x8x16xf32>
    %cst_20 = arith.constant 0.000000e+00 : f32
    %44 = vector.broadcast %cst_20 : f32 to vector<1x8x16xf32>
    %45 = arith.maximumf %43, %44 : vector<1x8x16xf32>
    %46 = math.sqrt %45 : vector<1x8x16xf32>
    %47 = vector.broadcast %14 : vector<1x8x1xf32> to vector<1x8x16xf32>
    %48 = arith.mulf %30, %47 : vector<1x8x16xf32>
    %cst_21 = arith.constant 1.000000e+00 : f32
    %49 = vector.broadcast %cst_21 : f32 to vector<1x8x1xf32>
    %50 = arith.subf %49, %14 : vector<1x8x1xf32>
    %51 = vector.broadcast %50 : vector<1x8x1xf32> to vector<1x8x16xf32>
    %52 = arith.mulf %46, %51 : vector<1x8x16xf32>
    %53 = arith.addf %48, %52 : vector<1x8x16xf32>
    %54 = tpu.iota {dimensions = array<i32: 2>} : vector<1x8x16xi32>
    %55 = tpu.bitcast %53 : vector<1x8x16xf32> -> vector<1x8x16xi32>
    %c-16_i32 = arith.constant -16 : i32
    %56 = vector.broadcast %c-16_i32 : i32 to vector<1x8x16xi32>
    %57 = arith.andi %55, %56 : vector<1x8x16xi32>
    %58 = arith.ori %57, %54 : vector<1x8x16xi32>
    %59 = tpu.iota {dimensions = array<i32: 2>} : vector<1x8x128xi32>
    %c0_i32 = arith.constant 0 : i32
    %60 = vector.broadcast %c0_i32 : i32 to vector<1x8x128xi32>
    %cst_22 = arith.constant dense<2147483647> : vector<1x8xi32>
    %61 = vector.multi_reduction <minsi>, %58, %cst_22 [2] : vector<1x8x16xi32> to vector<1x8xi32>
    %62 = vector.shape_cast %61 : vector<1x8xi32> to vector<1x8x1xi32>
    %c-16_i32_23 = arith.constant -16 : i32
    %63 = vector.broadcast %c-16_i32_23 : i32 to vector<1x8x1xi32>
    %64 = arith.andi %62, %63 : vector<1x8x1xi32>
    %65 = tpu.bitcast %64 : vector<1x8x1xi32> -> vector<1x8x1xf32>
    %c0_i32_24 = arith.constant 0 : i32
    %66 = vector.broadcast %c0_i32_24 : i32 to vector<1x8x128xi32>
    %67 = arith.cmpi eq, %59, %66 : vector<1x8x128xi32>
    %68 = tpu.bitcast %65 : vector<1x8x1xf32> -> vector<1x8x1xi32>
    %69 = vector.shape_cast %68 : vector<1x8x1xi32> to vector<1x8x1xi32>
    %70 = vector.broadcast %69 : vector<1x8x1xi32> to vector<1x8x128xi32>
    %71 = arith.select %67, %70, %60 : vector<1x8x128xi1>, vector<1x8x128xi32>
    %c5_i32 = arith.constant 5 : i32
    %72 = vector.broadcast %c5_i32 : i32 to vector<1x8x128xi32>
    %73 = arith.cmpi eq, %59, %72 : vector<1x8x128xi32>
    %c15_i32 = arith.constant 15 : i32
    %74 = vector.broadcast %c15_i32 : i32 to vector<1x8x1xi32>
    %75 = arith.andi %62, %74 : vector<1x8x1xi32>
    %76 = vector.shape_cast %75 : vector<1x8x1xi32> to vector<1x8x1xi32>
    %77 = vector.broadcast %76 : vector<1x8x1xi32> to vector<1x8x128xi32>
    %78 = arith.select %73, %77, %71 : vector<1x8x128xi1>, vector<1x8x128xi32>
    %79 = vector.broadcast %62 : vector<1x8x1xi32> to vector<1x8x16xi32>
    %80 = arith.cmpi eq, %58, %79 : vector<1x8x16xi32>
    %c2147483647_i32 = arith.constant 2147483647 : i32
    %81 = vector.broadcast %c2147483647_i32 : i32 to vector<1x8x16xi32>
    %82 = arith.select %80, %81, %58 : vector<1x8x16xi1>, vector<1x8x16xi32>
    %cst_25 = arith.constant dense<2147483647> : vector<1x8xi32>
    %83 = vector.multi_reduction <minsi>, %82, %cst_25 [2] : vector<1x8x16xi32> to vector<1x8xi32>
    %84 = vector.shape_cast %83 : vector<1x8xi32> to vector<1x8x1xi32>
    %c-16_i32_26 = arith.constant -16 : i32
    %85 = vector.broadcast %c-16_i32_26 : i32 to vector<1x8x1xi32>
    %86 = arith.andi %84, %85 : vector<1x8x1xi32>
    %87 = tpu.bitcast %86 : vector<1x8x1xi32> -> vector<1x8x1xf32>
    %c1_i32 = arith.constant 1 : i32
    %88 = vector.broadcast %c1_i32 : i32 to vector<1x8x128xi32>
    %89 = arith.cmpi eq, %59, %88 : vector<1x8x128xi32>
    %90 = tpu.bitcast %87 : vector<1x8x1xf32> -> vector<1x8x1xi32>
    %91 = vector.shape_cast %90 : vector<1x8x1xi32> to vector<1x8x1xi32>
    %92 = vector.broadcast %91 : vector<1x8x1xi32> to vector<1x8x128xi32>
    %93 = arith.select %89, %92, %78 : vector<1x8x128xi1>, vector<1x8x128xi32>
    %c6_i32 = arith.constant 6 : i32
    %94 = vector.broadcast %c6_i32 : i32 to vector<1x8x128xi32>
    %95 = arith.cmpi eq, %59, %94 : vector<1x8x128xi32>
    %c15_i32_27 = arith.constant 15 : i32
    %96 = vector.broadcast %c15_i32_27 : i32 to vector<1x8x1xi32>
    %97 = arith.andi %84, %96 : vector<1x8x1xi32>
    %98 = vector.shape_cast %97 : vector<1x8x1xi32> to vector<1x8x1xi32>
    %99 = vector.broadcast %98 : vector<1x8x1xi32> to vector<1x8x128xi32>
    %100 = arith.select %95, %99, %93 : vector<1x8x128xi1>, vector<1x8x128xi32>
    %101 = vector.broadcast %84 : vector<1x8x1xi32> to vector<1x8x16xi32>
    %102 = arith.cmpi eq, %82, %101 : vector<1x8x16xi32>
    %c2147483647_i32_28 = arith.constant 2147483647 : i32
    %103 = vector.broadcast %c2147483647_i32_28 : i32 to vector<1x8x16xi32>
    %104 = arith.select %102, %103, %82 : vector<1x8x16xi1>, vector<1x8x16xi32>
    %cst_29 = arith.constant dense<2147483647> : vector<1x8xi32>
    %105 = vector.multi_reduction <minsi>, %104, %cst_29 [2] : vector<1x8x16xi32> to vector<1x8xi32>
    %106 = vector.shape_cast %105 : vector<1x8xi32> to vector<1x8x1xi32>
    %c-16_i32_30 = arith.constant -16 : i32
    %107 = vector.broadcast %c-16_i32_30 : i32 to vector<1x8x1xi32>
    %108 = arith.andi %106, %107 : vector<1x8x1xi32>
    %109 = tpu.bitcast %108 : vector<1x8x1xi32> -> vector<1x8x1xf32>
    %c2_i32 = arith.constant 2 : i32
    %110 = vector.broadcast %c2_i32 : i32 to vector<1x8x128xi32>
    %111 = arith.cmpi eq, %59, %110 : vector<1x8x128xi32>
    %112 = tpu.bitcast %109 : vector<1x8x1xf32> -> vector<1x8x1xi32>
    %113 = vector.shape_cast %112 : vector<1x8x1xi32> to vector<1x8x1xi32>
    %114 = vector.broadcast %113 : vector<1x8x1xi32> to vector<1x8x128xi32>
    %115 = arith.select %111, %114, %100 : vector<1x8x128xi1>, vector<1x8x128xi32>
    %c7_i32 = arith.constant 7 : i32
    %116 = vector.broadcast %c7_i32 : i32 to vector<1x8x128xi32>
    %117 = arith.cmpi eq, %59, %116 : vector<1x8x128xi32>
    %c15_i32_31 = arith.constant 15 : i32
    %118 = vector.broadcast %c15_i32_31 : i32 to vector<1x8x1xi32>
    %119 = arith.andi %106, %118 : vector<1x8x1xi32>
    %120 = vector.shape_cast %119 : vector<1x8x1xi32> to vector<1x8x1xi32>
    %121 = vector.broadcast %120 : vector<1x8x1xi32> to vector<1x8x128xi32>
    %122 = arith.select %117, %121, %115 : vector<1x8x128xi1>, vector<1x8x128xi32>
    %123 = vector.broadcast %106 : vector<1x8x1xi32> to vector<1x8x16xi32>
    %124 = arith.cmpi eq, %104, %123 : vector<1x8x16xi32>
    %c2147483647_i32_32 = arith.constant 2147483647 : i32
    %125 = vector.broadcast %c2147483647_i32_32 : i32 to vector<1x8x16xi32>
    %126 = arith.select %124, %125, %104 : vector<1x8x16xi1>, vector<1x8x16xi32>
    %cst_33 = arith.constant dense<2147483647> : vector<1x8xi32>
    %127 = vector.multi_reduction <minsi>, %126, %cst_33 [2] : vector<1x8x16xi32> to vector<1x8xi32>
    %128 = vector.shape_cast %127 : vector<1x8xi32> to vector<1x8x1xi32>
    %c-16_i32_34 = arith.constant -16 : i32
    %129 = vector.broadcast %c-16_i32_34 : i32 to vector<1x8x1xi32>
    %130 = arith.andi %128, %129 : vector<1x8x1xi32>
    %131 = tpu.bitcast %130 : vector<1x8x1xi32> -> vector<1x8x1xf32>
    %c3_i32 = arith.constant 3 : i32
    %132 = vector.broadcast %c3_i32 : i32 to vector<1x8x128xi32>
    %133 = arith.cmpi eq, %59, %132 : vector<1x8x128xi32>
    %134 = tpu.bitcast %131 : vector<1x8x1xf32> -> vector<1x8x1xi32>
    %135 = vector.shape_cast %134 : vector<1x8x1xi32> to vector<1x8x1xi32>
    %136 = vector.broadcast %135 : vector<1x8x1xi32> to vector<1x8x128xi32>
    %137 = arith.select %133, %136, %122 : vector<1x8x128xi1>, vector<1x8x128xi32>
    %c8_i32 = arith.constant 8 : i32
    %138 = vector.broadcast %c8_i32 : i32 to vector<1x8x128xi32>
    %139 = arith.cmpi eq, %59, %138 : vector<1x8x128xi32>
    %c15_i32_35 = arith.constant 15 : i32
    %140 = vector.broadcast %c15_i32_35 : i32 to vector<1x8x1xi32>
    %141 = arith.andi %128, %140 : vector<1x8x1xi32>
    %142 = vector.shape_cast %141 : vector<1x8x1xi32> to vector<1x8x1xi32>
    %143 = vector.broadcast %142 : vector<1x8x1xi32> to vector<1x8x128xi32>
    %144 = arith.select %139, %143, %137 : vector<1x8x128xi1>, vector<1x8x128xi32>
    %145 = vector.broadcast %128 : vector<1x8x1xi32> to vector<1x8x16xi32>
    %146 = arith.cmpi eq, %126, %145 : vector<1x8x16xi32>
    %c2147483647_i32_36 = arith.constant 2147483647 : i32
    %147 = vector.broadcast %c2147483647_i32_36 : i32 to vector<1x8x16xi32>
    %148 = arith.select %146, %147, %126 : vector<1x8x16xi1>, vector<1x8x16xi32>
    %cst_37 = arith.constant dense<2147483647> : vector<1x8xi32>
    %149 = vector.multi_reduction <minsi>, %148, %cst_37 [2] : vector<1x8x16xi32> to vector<1x8xi32>
    %150 = vector.shape_cast %149 : vector<1x8xi32> to vector<1x8x1xi32>
    %c-16_i32_38 = arith.constant -16 : i32
    %151 = vector.broadcast %c-16_i32_38 : i32 to vector<1x8x1xi32>
    %152 = arith.andi %150, %151 : vector<1x8x1xi32>
    %153 = tpu.bitcast %152 : vector<1x8x1xi32> -> vector<1x8x1xf32>
    %c4_i32 = arith.constant 4 : i32
    %154 = vector.broadcast %c4_i32 : i32 to vector<1x8x128xi32>
    %155 = arith.cmpi eq, %59, %154 : vector<1x8x128xi32>
    %156 = tpu.bitcast %153 : vector<1x8x1xf32> -> vector<1x8x1xi32>
    %157 = vector.shape_cast %156 : vector<1x8x1xi32> to vector<1x8x1xi32>
    %158 = vector.broadcast %157 : vector<1x8x1xi32> to vector<1x8x128xi32>
    %159 = arith.select %155, %158, %144 : vector<1x8x128xi1>, vector<1x8x128xi32>
    %c9_i32 = arith.constant 9 : i32
    %160 = vector.broadcast %c9_i32 : i32 to vector<1x8x128xi32>
    %161 = arith.cmpi eq, %59, %160 : vector<1x8x128xi32>
    %c15_i32_39 = arith.constant 15 : i32
    %162 = vector.broadcast %c15_i32_39 : i32 to vector<1x8x1xi32>
    %163 = arith.andi %150, %162 : vector<1x8x1xi32>
    %164 = vector.shape_cast %163 : vector<1x8x1xi32> to vector<1x8x1xi32>
    %165 = vector.broadcast %164 : vector<1x8x1xi32> to vector<1x8x128xi32>
    %166 = arith.select %161, %165, %159 : vector<1x8x128xi1>, vector<1x8x128xi32>
    %c0_40 = arith.constant 0 : index
    %c0_41 = arith.constant 0 : index
    %c0_42 = arith.constant 0 : index
    %167 = vector.load %arg7[%c0_40, %c0_41, %c0_42] : memref<1x8x128xi32, #tpu.memory_space<vmem>>, vector<1x8x128xi32>
    tpu.vector_store %arg7[%c0_40, %c0_41, %c0_42], %166 {strides = array<i32>} : memref<1x8x128xi32, #tpu.memory_space<vmem>>, vector<1x8x128xi32>,
    return
  }
  func.func @transform_0(%arg0: i32, %arg1: i32) -> (i32, i32, i32) {
    %c0_i32 = arith.constant 0 : i32
    %c0_i32_0 = arith.constant 0 : i32
    return %arg0, %arg1, %c0_i32 : i32, i32, i32
  }
  func.func @transform_1(%arg0: i32, %arg1: i32) -> (i32, i32, i32) {
    %c0_i32 = arith.constant 0 : i32
    %c0_i32_0 = arith.constant 0 : i32
    %c0_i32_1 = arith.constant 0 : i32
    return %arg0, %c0_i32, %c0_i32_0 : i32, i32, i32
  }
  func.func @transform_2(%arg0: i32, %arg1: i32) -> (i32, i32, i32) {
    %c0_i32 = arith.constant 0 : i32
    %c0_i32_0 = arith.constant 0 : i32
    %c0_i32_1 = arith.constant 0 : i32
    return %arg0, %c0_i32, %c0_i32_0 : i32, i32, i32
  }
  func.func @transform_3(%arg0: i32, %arg1: i32) -> (i32, i32) {
    %c0_i32 = arith.constant 0 : i32
    %c0_i32_0 = arith.constant 0 : i32
    %c0_i32_1 = arith.constant 0 : i32
    return %c0_i32, %c0_i32_0 : i32, i32
  }
  func.func @transform_4(%arg0: i32, %arg1: i32) -> (i32, i32) {
    %c0_i32 = arith.constant 0 : i32
    %c0_i32_0 = arith.constant 0 : i32
    %c0_i32_1 = arith.constant 0 : i32
    return %c0_i32, %c0_i32_0 : i32, i32
  }
  func.func @transform_5(%arg0: i32, %arg1: i32) -> (i32, i32, i32) {
    %c0_i32 = arith.constant 0 : i32
    %c0_i32_0 = arith.constant 0 : i32
    return %arg0, %arg1, %c0_i32 : i32, i32, i32
  }
}

</mosaic_0001>

<llo_original>
// kernel: tpu_custom_call.1
$region0: #{tpu_custom_call.1}
  #allocation0 [shape = 'u32[]', space=smem, size = 0x4, offset = 0x4, fixed_abs, tag = 'smem constant byte address 0x4 - core index']
  #allocation1 [shape = 'u32[144,128]{1,0:T(1,128)}', space=vmem, size = 0x12000, scoped, tag = 'internal scratch']
  %s0 = inlined_call_operand.vmem [shape: f32[2,8,32], index: 0, kind: input, shape index: {}]
  %s1 = inlined_call_operand.vmem [shape: f32[2,33,16], index: 1, kind: input, shape index: {}]
  %s2 = inlined_call_operand.vmem [shape: f32[2,33,16], index: 2, kind: input, shape index: {}]
  %s3 = inlined_call_operand.vmem [shape: f32[32,128], index: 3, kind: input, shape index: {}]
  %s4 = inlined_call_operand.vmem [shape: f32[1,128], index: 4, kind: input, shape index: {}]
  %s5 = inlined_call_operand.hbm [shape: s32[2,8,128], index: 5, kind: output, shape index: {}]
  %s6 = sld [smem:[#allocation0]]
  $region53: #{tpu_custom_call.1} parent=0
    _
  %s8 = ssub.s32 1, %s6
  %s9 = scalar_select 0, %s8, %s6
  $region1: #{tpu_custom_call.1} parent=0
    #allocation2 [shape = 'u8[8192]{0}', space=vmem, size = 0x2000, scoped, tag = 'output window, operand 0']
    #allocation3 [shape = 's32[2]{0}', space=sflag, size = 0x8, scoped, tag = 'scoped memory for tpu_custom_call.1']
    %10 = vsyncpa [#allocation3], 0
    %s11 = scalar_lea.sflag [#allocation3], 1
    %12 = vsyncpa %s11, 0
    loop: start=0, step=1, limit=4
    $region2: #{tpu_custom_call.1} parent=1 // loop_pre_header
      _
    $region3: #{tpu_custom_call.1} parent=1 // loop_header
      %s14 = sphi 0, %s18
      %p15 = scmp.ge.s32.totalorder %s14, 4
      %s21 = sphi 0, %s33
      %s22 = sphi 0, %s29
      %s23 = sphi 0, %s21
      %s24 = sphi 0, %s22
      %s25 = sphi 0, %s23
      %s26 = sphi 0, %s24
      %s38 = sphi 0, %s40
      %s41 = sphi 0, %s38
      %s42 = sphi 0, %s41
      %s58 = sphi 0, %s42
      %s64 = sphi 0, %s66
      %s67 = sphi 0, %s64
      %s68 = sphi 0, %s67
      %s84 = sphi 0, %s68
      %s90 = sphi 0, %s92
      %s93 = sphi 0, %s90
      %s94 = sphi 0, %s93
      %s110 = sphi 0, %s94
      %s114 = sphi 0, %s114
      %s116 = sphi 0, %s114
      %s117 = sphi 0, %s116
      %s131 = sphi 0, %s117
      %s135 = sphi 0, %s135
      %s137 = sphi 0, %s135
      %s138 = sphi 0, %s137
      %s152 = sphi 0, %s138
      %s160 = sphi 0, %s162
      %s163 = sphi 0, %s160
      %s164 = sphi 0, %s163
      %s180 = sphi 0, %s164
    $region4: #{tpu_custom_call.1} parent=1 // loop_header_branch
      %17 = sbr.rel (%p15) target = $region8
    $region5: #{tpu_custom_call.1} parent=1 // loop_body
      %s19 = ssub.s32 %s14, 1
      %s20 = ssub.s32 %s14, 2
      %s27 = sadd.s32 1, %s22
      %p28 = scmp.ge.s32.totalorder %s27, 1
      %s29 = scalar_select %p28, 0, %s27
      %s30 = sadd.s32 1, %s21
      %s31 = scalar_select %p28, %s30, %s21
      %p32 = scmp.ge.s32.totalorder %s31, 2
      %s33 = scalar_select %p32, 0, %s31
      %s34 = ssub.s32 %s21, %s33
      %s35 = ssub.s32 %s22, %s29
      %s36 = sor.u32 %s34, %s35
      %p37 = scmp.eq.s32.totalorder %s36, 0
      %s39 = sadd.s32 %s38, 1
      %s40 = scalar_select %p37, %s38, %s39
      %p43 = pneg %p37
      %p44 = scmp.eq.s32.totalorder %s14, 1
      %p45 = por %p43, %p44
      %p46 = scmp.ne.s32.totalorder %s38, %s41
      %p47 = scmp.eq.s32.totalorder %s14, 0
      %p48 = por %p46, %p47
      %p49 = scmp.ne.s32.totalorder %s38, %s41
      %p50 = scmp.eq.s32.totalorder %s19, 1
      %p51 = por %p49, %p50
      %p52 = scmp.ne.s32.totalorder %s41, %s42
      %p53 = scmp.eq.s32.totalorder %s19, 0
      %p54 = por %p52, %p53
      %p55 = scmp.ne.s32.totalorder %s41, %s42
      %p56 = scmp.eq.s32.totalorder %s20, 1
      %p57 = por %p55, %p56
      %p59 = scmp.ne.s32.totalorder %s42, %s58
      %p60 = scmp.eq.s32.totalorder %s20, 0
      %p61 = por %p59, %p60
      %s62 = ssub.s32 %s21, %s33
      %p63 = scmp.eq.s32.totalorder %s62, 0
      %s65 = sadd.s32 %s64, 1
      %s66 = scalar_select %p63, %s64, %s65
      %p69 = pneg %p63
      %p70 = scmp.eq.s32.totalorder %s14, 1
      %p71 = por %p69, %p70
      %p72 = scmp.ne.s32.totalorder %s64, %s67
      %p73 = scmp.eq.s32.totalorder %s14, 0
      %p74 = por %p72, %p73
      %p75 = scmp.ne.s32.totalorder %s64, %s67
      %p76 = scmp.eq.s32.totalorder %s19, 1
      %p77 = por %p75, %p76
      %p78 = scmp.ne.s32.totalorder %s67, %s68
      %p79 = scmp.eq.s32.totalorder %s19, 0
      %p80 = por %p78, %p79
      %p81 = scmp.ne.s32.totalorder %s67, %s68
      %p82 = scmp.eq.s32.totalorder %s20, 1
      %p83 = por %p81, %p82
      %p85 = scmp.ne.s32.totalorder %s68, %s84
      %p86 = scmp.eq.s32.totalorder %s20, 0
      %p87 = por %p85, %p86
      %s88 = ssub.s32 %s21, %s33
      %p89 = scmp.eq.s32.totalorder %s88, 0
      %s91 = sadd.s32 %s90, 1
      %s92 = scalar_select %p89, %s90, %s91
      %p95 = pneg %p89
      %p96 = scmp.eq.s32.totalorder %s14, 1
      %p97 = por %p95, %p96
      %p98 = scmp.ne.s32.totalorder %s90, %s93
      %p99 = scmp.eq.s32.totalorder %s14, 0
      %p100 = por %p98, %p99
      %p101 = scmp.ne.s32.totalorder %s90, %s93
      %p102 = scmp.eq.s32.totalorder %s19, 1
      %p103 = por %p101, %p102
      %p104 = scmp.ne.s32.totalorder %s93, %s94
      %p105 = scmp.eq.s32.totalorder %s19, 0
      %p106 = por %p104, %p105
      %p107 = scmp.ne.s32.totalorder %s93, %s94
      %p108 = scmp.eq.s32.totalorder %s20, 1
      %p109 = por %p107, %p108
      %p111 = scmp.ne.s32.totalorder %s94, %s110
      %p112 = scmp.eq.s32.totalorder %s20, 0
      %p113 = por %p111, %p112
      %s115 = sadd.s32 %s114, 1
      %p118 = scmp.eq.s32.totalorder %s14, 1
      %p119 = scmp.ne.s32.totalorder %s114, %s116
      %p120 = scmp.eq.s32.totalorder %s14, 0
      %p121 = por %p119, %p120
      %p122 = scmp.ne.s32.totalorder %s114, %s116
      %p123 = scmp.eq.s32.totalorder %s19, 1
      %p124 = por %p122, %p123
      %p125 = scmp.ne.s32.totalorder %s116, %s117
      %p126 = scmp.eq.s32.totalorder %s19, 0
      %p127 = por %p125, %p126
      %p128 = scmp.ne.s32.totalorder %s116, %s117
      %p129 = scmp.eq.s32.totalorder %s20, 1
      %p130 = por %p128, %p129
      %p132 = scmp.ne.s32.totalorder %s117, %s131
      %p133 = scmp.eq.s32.totalorder %s20, 0
      %p134 = por %p132, %p133
      %s136 = sadd.s32 %s135, 1
      %p139 = scmp.eq.s32.totalorder %s14, 1
      %p140 = scmp.ne.s32.totalorder %s135, %s137
      %p141 = scmp.eq.s32.totalorder %s14, 0
      %p142 = por %p140, %p141
      %p143 = scmp.ne.s32.totalorder %s135, %s137
      %p144 = scmp.eq.s32.totalorder %s19, 1
      %p145 = por %p143, %p144
      %p146 = scmp.ne.s32.totalorder %s137, %s138
      %p147 = scmp.eq.s32.totalorder %s19, 0
      %p148 = por %p146, %p147
      %p149 = scmp.ne.s32.totalorder %s137, %s138
      %p150 = scmp.eq.s32.totalorder %s20, 1
      %p151 = por %p149, %p150
      %p153 = scmp.ne.s32.totalorder %s138, %s152
      %p154 = scmp.eq.s32.totalorder %s20, 0
      %p155 = por %p153, %p154
      %s156 = ssub.s32 %s21, %s33
      %s157 = ssub.s32 %s22, %s29
      %s158 = sor.u32 %s156, %s157
      %p159 = scmp.eq.s32.totalorder %s158, 0
      %s161 = sadd.s32 %s160, 1
      %s162 = scalar_select %p159, %s160, %s161
      %p165 = pneg %p159
      %p166 = scmp.eq.s32.totalorder %s14, 1
      %p167 = por %p165, %p166
      %p168 = scmp.ne.s32.totalorder %s160, %s163
      %p169 = scmp.eq.s32.totalorder %s14, 0
      %p170 = por %p168, %p169
      %p171 = scmp.ne.s32.totalorder %s160, %s163
      %p172 = scmp.eq.s32.totalorder %s19, 1
      %p173 = por %p171, %p172
      %p174 = scmp.ne.s32.totalorder %s163, %s164
      %p175 = scmp.eq.s32.totalorder %s19, 0
      %p176 = por %p174, %p175
      %p177 = scmp.ne.s32.totalorder %s163, %s164
      %p178 = scmp.eq.s32.totalorder %s20, 1
      %p179 = por %p177, %p178
      %p181 = scmp.ne.s32.totalorder %s164, %s180
      %p182 = scmp.eq.s32.totalorder %s20, 0
      %p183 = por %p181, %p182
      %p184 = scmp.le.s32.totalorder 1, %s14
      %p185 = scmp.lt.s32.totalorder %s14, 3
      %p186 = pnand %p184, %p185
      %p187 = pneg %p186
      // Predicated region
      $region9: #{tpu_custom_call.1} parent=5 // pred_check
        _
      $region10: #{tpu_custom_call.1} parent=5 // pred_check_branch
        %189 = sbr.rel (%p186) target = $region12
      $region11: #{tpu_custom_call.1} parent=5 // pred_region
        %s190 = ssub.s32 %s14, 1
        // Predicated region
        $region13: #{tpu_custom_call.1} parent=11 // pred_check
          %p191 = pneg %p127
        $region14: #{tpu_custom_call.1} parent=11 // pred_check_branch
          %193 = sbr.rel (%p191) target = $region16
        $region15: #{tpu_custom_call.1} parent=11 // pred_region
          _
        $region16: #{tpu_custom_call.1} parent=11 // pred_fallthru
          _
        // Predicated region
        $region17: #{tpu_custom_call.1} parent=11 // pred_check
          %p194 = pneg %p148
        $region18: #{tpu_custom_call.1} parent=11 // pred_check_branch
          %196 = sbr.rel (%p194) target = $region20
        $region19: #{tpu_custom_call.1} parent=11 // pred_region
          _
        $region20: #{tpu_custom_call.1} parent=11 // pred_fallthru
          _
      $region12: #{tpu_custom_call.1} parent=5 // pred_fallthru
        _
      %p197 = scmp.lt.s32.totalorder %s14, 2
      // Predicated region
      $region21: #{tpu_custom_call.1} parent=5 // pred_check
        %p198 = pneg %p197
      $region22: #{tpu_custom_call.1} parent=5 // pred_check_branch
        %200 = sbr.rel (%p198) target = $region24
      $region23: #{tpu_custom_call.1} parent=5 // pred_region
        // Predicated region
        $region25: #{tpu_custom_call.1} parent=23 // pred_check
          %p201 = pneg %p48
        $region26: #{tpu_custom_call.1} parent=23 // pred_check_branch
          %203 = sbr.rel (%p201) target = $region28
        $region27: #{tpu_custom_call.1} parent=23 // pred_region
          %p204 = scmp.lt.s32.totalorder %s21, 1
          %s205 = scalar_select %p204, %s21, 1
          %p206 = scmp.lt.s32.totalorder %s22, 0
          %s207 = scalar_select %p206, %s22, 0
          %s208 = sadd.s32 %s207, %s205
          %s209 = smul.addr %s208, 8
          %s210 = scalar_lea.vmem %s0, %s209
        $region28: #{tpu_custom_call.1} parent=23 // pred_fallthru
          _
        // Predicated region
        $region29: #{tpu_custom_call.1} parent=23 // pred_check
          %p211 = pneg %p74
        $region30: #{tpu_custom_call.1} parent=23 // pred_check_branch
          %213 = sbr.rel (%p211) target = $region32
        $region31: #{tpu_custom_call.1} parent=23 // pred_region
          %p214 = scmp.lt.s32.totalorder %s21, 1
          %s215 = scalar_select %p214, %s21, 1
          %s216 = smul.addr %s215, 5
          %s217 = smul.addr %s216, 8
          %s218 = scalar_lea.vmem %s1, %s217
        $region32: #{tpu_custom_call.1} parent=23 // pred_fallthru
          _
        // Predicated region
        $region33: #{tpu_custom_call.1} parent=23 // pred_check
          %p219 = pneg %p100
        $region34: #{tpu_custom_call.1} parent=23 // pred_check_branch
          %221 = sbr.rel (%p219) target = $region36
        $region35: #{tpu_custom_call.1} parent=23 // pred_region
          %p222 = scmp.lt.s32.totalorder %s21, 1
          %s223 = scalar_select %p222, %s21, 1
          %s224 = smul.addr %s223, 5
          %s225 = smul.addr %s224, 8
          %s226 = scalar_lea.vmem %s2, %s225
        $region36: #{tpu_custom_call.1} parent=23 // pred_fallthru
          _
      $region24: #{tpu_custom_call.1} parent=5 // pred_fallthru
        _
      %p227 = scmp.le.s32.totalorder 1, %s14
      %p228 = scmp.lt.s32.totalorder %s14, 3
      %p229 = pnand %p227, %p228
      %p230 = pneg %p229
      // Predicated region
      $region37: #{tpu_custom_call.1} parent=5 // pred_check
        _
      $region38: #{tpu_custom_call.1} parent=5 // pred_check_branch
        %232 = sbr.rel (%p229) target = $region40
      $region39: #{tpu_custom_call.1} parent=5 // pred_region
        %s233 = ssub.s32 %s14, 1
        %p234 = scmp.lt.s32.totalorder %s23, 1
        %s235 = scalar_select %p234, %s23, 1
        %p236 = scmp.lt.s32.totalorder %s24, 0
        %s237 = scalar_select %p236, %s24, 0
        %s238 = sadd.s32 %s237, %s235
        %s239 = smul.addr %s238, 8
        %s240 = scalar_lea.vmem %s0, %s239
        %p241 = pneg %p54
        %p242 = pneg %p51
        %p243 = scmp.lt.s32.totalorder %s23, 1
        %s244 = scalar_select %p243, %s23, 1
        %s245 = smul.addr %s244, 5
        %s246 = smul.addr %s245, 8
        %s247 = scalar_lea.vmem %s1, %s246
        %p248 = pneg %p80
        %p249 = pneg %p77
        %p250 = scmp.lt.s32.totalorder %s23, 1
        %s251 = scalar_select %p250, %s23, 1
        %s252 = smul.addr %s251, 5
        %s253 = smul.addr %s252, 8
        %s254 = scalar_lea.vmem %s2, %s253
        %p255 = pneg %p106
        %p256 = pneg %p103
        %p257 = pneg %p127
        %p258 = pneg %p124
        %p259 = pneg %p148
        %p260 = pneg %p145
        %p261 = pneg %p176
        %p262 = pneg %p173
        %s263 = sand.u32 %s163, 1
        %s264 = scalar_lea.sflag [#allocation3], %s263
        %s265 = sand.u32 %s163, 1
        %s266 = smul.addr %s265, 8
        %s267 = scalar_lea.vmem [#allocation2], %s266
        %p268 = scmp.lt.s32.totalorder %s23, 1
        %s269 = scalar_select %p268, %s23, 1
        %p270 = scmp.lt.s32.totalorder %s24, 0
        %s271 = scalar_select %p270, %s24, 0
        %s272 = sadd.s32 %s271, %s269
        %s273 = smul.addr %s272, 8
        %s274 = scalar_lea.vmem %s0, %s273
        %p275 = scmp.lt.s32.totalorder %s23, 1
        %s276 = scalar_select %p275, %s23, 1
        %s277 = smul.addr %s276, 5
        %s278 = smul.addr %s277, 8
        %s279 = scalar_lea.vmem %s1, %s278
        %p280 = scmp.lt.s32.totalorder %s23, 1
        %s281 = scalar_select %p280, %s23, 1
        %s282 = smul.addr %s281, 5
        %s283 = smul.addr %s282, 8
        %s284 = scalar_lea.vmem %s2, %s283
        %v285 = vld [vmem:[%s274] sm:$0xff]
        %v286 = vld [vmem:[%s3] sm:$0xff]
        %v287 = vld [vmem:[%s3 + $0x8] sm:$0xff]
        %v288 = vld [vmem:[%s3 + $0x10] sm:$0xff]
        %v289 = vld [vmem:[%s3 + $0x18] sm:$0xff]
        %v290 = vld [vmem:[%s4] sm:$0x1]
        %v292 = vlaneseq
        %v293 = vshrl.u32 %v292, 7
        %v294 = vsub.s32 0, %v293
        %v295 = vrot.slane %v290, %v294
        %vm297 = vcmask 261120
        %v299 = vsel %vm297, %v285, 0
        %301 = vmatprep.subr.mxu0 0.0
        %302 = vmatpush1.msra.mxu0 0.0
        %303 = vmatprep.subr.mxu0 0.0
        %304 = vmatpush1.msra.mxu0 0.0
        %305 = vmatprep.subr.mxu0 0.0
        %306 = vmatpush1.msra.mxu0 0.0
        %307 = vmatprep.subr.mxu0 0.0
        %308 = vmatpush1.msra.mxu0 0.0
        %309 = vmatprep.subr.mxu0 0.0
        %310 = vmatpush1.msra.mxu0 0.0
        %311 = vmatprep.subr.mxu0 0.0
        %312 = vmatpush1.msra.mxu0 0.0
        %313 = vmatprep.subr.mxu0 0.0
        %314 = vmatpush1.msra.mxu0 0.0
        %315 = vmatprep.subr.mxu0 0.0
        %316 = vmatpush1.msra.mxu0 0.0
        %317 = vmatprep.subr.mxu0 0.0
        %318 = vmatpush1.msra.mxu0 0.0
        %319 = vmatprep.subr.mxu0 0.0
        %320 = vmatpush1.msra.mxu0 0.0
        %321 = vmatprep.subr.mxu0 0.0
        %322 = vmatpush1.msra.mxu0 0.0
        %323 = vmatprep.subr.mxu0 0.0
        %324 = vmatpush1.msra.mxu0 0.0
        %325 = vmatprep.subr.mxu0 0.0
        %326 = vmatpush1.msra.mxu0 %v289
        %327 = vmatprep.subr.mxu0 0.0
        %328 = vmatpush1.msra.mxu0 %v288
        %329 = vmatprep.subr.mxu0 0.0
        %330 = vmatpush1.msra.mxu0 %v287
        %331 = vmatprep.subr.mxu0 0.0
        %332 = vmatpush1.msra.mxu0 %v286
        %333 = vmatprep.subr.mxu0 0.0
        %334 = vmatpush2.msra.mxu0 0.0
        %335 = vmatprep.subr.mxu0 0.0
        %336 = vmatpush2.msra.mxu0 0.0
        %337 = vmatprep.subr.mxu0 0.0
        %338 = vmatpush2.msra.mxu0 0.0
        %339 = vmatprep.subr.mxu0 0.0
        %340 = vmatpush2.msra.mxu0 0.0
        %341 = vmatprep.subr.mxu0 0.0
        %342 = vmatpush2.msra.mxu0 0.0
        %343 = vmatprep.subr.mxu0 0.0
        %344 = vmatpush2.msra.mxu0 0.0
        %345 = vmatprep.subr.mxu0 0.0
        %346 = vmatpush2.msra.mxu0 0.0
        %347 = vmatprep.subr.mxu0 0.0
        %348 = vmatpush2.msra.mxu0 0.0
        %349 = vmatprep.subr.mxu0 0.0
        %350 = vmatpush2.msra.mxu0 0.0
        %351 = vmatprep.subr.mxu0 0.0
        %352 = vmatpush2.msra.mxu0 0.0
        %353 = vmatprep.subr.mxu0 0.0
        %354 = vmatpush2.msra.mxu0 0.0
        %355 = vmatprep.subr.mxu0 0.0
        %356 = vmatpush2.msra.mxu0 0.0
        %357 = vmatprep.subr.mxu0 0.0
        %358 = vmatpush2.msra.mxu0 0.0
        %359 = vmatprep.subr.mxu0 0.0
        %360 = vmatpush2.msra.mxu0 0.0
        %361 = vmatprep.subr.mxu0 0.0
        %362 = vmatpush2.msra.mxu0 0.0
        %363 = vmatprep.subr.mxu0 0.0
        %364 = vmatpush2.msra.mxu0 0.0
        %365 = vmatprep.mubr.f32.mxu0 0.0
        %366 = vmatmul.mubr.f32.gmra.mxu0 %v299
        %v367 = vpop.f32.mrf.mxu0
        %v368 = vadd.f32 %v295, %v367
        %v369 = vpop.f32.mrf.mxu0
        %370 = vdwg.mxu0
        %v371 = vxor.u32 %v368, 2147483648
        %v372 = vmul.f32 %v371, 1.442695
        %v373 = vpow.pop %v372
        %v374 = vadd.f32 %v373, 1.0
        %v375 = vrcp.pop %v374
        %v376 = vmul.f32 1.0, %v375
        %v377 = vld [vmem:[%s279] sm:$0xff]
        %v378 = vld [vmem:[%s279 + $0x8] sm:$0xff]
        %v379 = vld [vmem:[%s279 + $0x10] sm:$0xff]
        %v380 = vld [vmem:[%s279 + $0x18] sm:$0xff]
        %v381 = vld [vmem:[%s279 + $0x20] sm:$0x1]
        %v382 = vmul.f32 %v368, %v368
        %v383 = vsel %vm297, %v382, 0.0
        %384 = vadd.xlane.f32.xlu0 %v383
        %v385 = vpop.xlane.xlu0 %384
        %v387 = vsel %vm297, %v368, 0
        %389 = vmatprep.subr.mxu0 0.0
        %390 = vmatpush1.msra.mxu0 0.0
        %391 = vmatprep.subr.mxu0 0.0
        %392 = vmatpush1.msra.mxu0 0.0
        %393 = vmatprep.subr.mxu0 0.0
        %394 = vmatpush1.msra.mxu0 0.0
        %395 = vmatprep.subr.mxu0 0.0
        %396 = vmatpush1.msra.mxu0 0.0
        %397 = vmatprep.subr.mxu0 0.0
        %398 = vmatpush1.msra.mxu0 0.0
        %399 = vmatprep.subr.mxu0 0.0
        %400 = vmatpush1.msra.mxu0 0.0
        %401 = vmatprep.subr.mxu0 0.0
        %402 = vmatpush1.msra.mxu0 0.0
        %403 = vmatprep.subr.mxu0 0.0
        %404 = vmatpush1.msra.mxu0 0.0
        %405 = vmatprep.subr.mxu0 0.0
        %406 = vmatpush1.msra.mxu0 0.0
        %407 = vmatprep.subr.mxu0 0.0
        %408 = vmatpush1.msra.mxu0 0.0
        %409 = vmatprep.subr.mxu0 0.0
        %410 = vmatpush1.msra.mxu0 0.0
        %411 = vmatprep.subr.mxu0 0.0
        %412 = vmatpush1.msra.mxu0 0.0
        %413 = vmatprep.subr.mxu0 0.0
        %414 = vmatpush1.msra.mxu0 %v380
        %415 = vmatprep.subr.mxu0 0.0
        %416 = vmatpush1.msra.mxu0 %v379
        %417 = vmatprep.subr.mxu0 0.0
        %418 = vmatpush1.msra.mxu0 %v378
        %419 = vmatprep.subr.mxu0 0.0
        %420 = vmatpush1.msra.mxu0 %v377
        %421 = vmatprep.subr.mxu0 0.0
        %422 = vmatpush2.msra.mxu0 0.0
        %423 = vmatprep.subr.mxu0 0.0
        %424 = vmatpush2.msra.mxu0 0.0
        %425 = vmatprep.subr.mxu0 0.0
        %426 = vmatpush2.msra.mxu0 0.0
        %427 = vmatprep.subr.mxu0 0.0
        %428 = vmatpush2.msra.mxu0 0.0
        %429 = vmatprep.subr.mxu0 0.0
        %430 = vmatpush2.msra.mxu0 0.0
        %431 = vmatprep.subr.mxu0 0.0
        %432 = vmatpush2.msra.mxu0 0.0
        %433 = vmatprep.subr.mxu0 0.0
        %434 = vmatpush2.msra.mxu0 0.0
        %435 = vmatprep.subr.mxu0 0.0
        %436 = vmatpush2.msra.mxu0 0.0
        %437 = vmatprep.subr.mxu0 0.0
        %438 = vmatpush2.msra.mxu0 0.0
        %439 = vmatprep.subr.mxu0 0.0
        %440 = vmatpush2.msra.mxu0 0.0
        %441 = vmatprep.subr.mxu0 0.0
        %442 = vmatpush2.msra.mxu0 0.0
        %443 = vmatprep.subr.mxu0 0.0
        %444 = vmatpush2.msra.mxu0 0.0
        %445 = vmatprep.subr.mxu0 0.0
        %446 = vmatpush2.msra.mxu0 0.0
        %447 = vmatprep.subr.mxu0 0.0
        %448 = vmatpush2.msra.mxu0 0.0
        %449 = vmatprep.subr.mxu0 0.0
        %450 = vmatpush2.msra.mxu0 0.0
        %451 = vmatprep.subr.mxu0 0.0
        %452 = vmatpush2.msra.mxu0 0.0
        %453 = vmatprep.mubr.f32.mxu0 0.0
        %454 = vmatmul.mubr.f32.gmra.mxu0 %v387
        %v455 = vpop.f32.mrf.mxu0
        %v456 = vadd.f32 0.0, %v455
        %v457 = vpop.f32.mrf.mxu0
        %458 = vdwg.mxu0
        %v459 = vlaneseq
        %v460 = vshrl.u32 %v459, 7
        %v461 = vsub.s32 0, %v460
        %v462 = vrot.slane %v381, %v461
        %v463 = vadd.f32 %v385, %v462
        %v464 = vmul.f32 %v456, 2.0
        %v465 = vsub.f32 %v463, %v464
        %v466 = vmax.f32 %v465, 0.0
        %v467 = vrsqrt.pop %v466
        %v468 = vmul.f32 %v466, %v467
        %vm469 = vcmp.eq.f32.partialorder %v466, inf
        %v470 = vsel %vm469, %v466, %v468
        %vm471 = vcmp.eq.f32.partialorder %v466, 0.0
        %v472 = vand.u32 %v466, 2147483648
        %v473 = vsel %vm471, %v472, %v470
        %v474 = vld [vmem:[%s284] sm:$0xff]
        %v475 = vld [vmem:[%s284 + $0x8] sm:$0xff]
        %v476 = vld [vmem:[%s284 + $0x10] sm:$0xff]
        %v477 = vld [vmem:[%s284 + $0x18] sm:$0xff]
        %v478 = vld [vmem:[%s284 + $0x20] sm:$0x1]
        %479 = vmatprep.subr.mxu0 0.0
        %480 = vmatpush1.msra.mxu0 0.0
        %481 = vmatprep.subr.mxu0 0.0
        %482 = vmatpush1.msra.mxu0 0.0
        %483 = vmatprep.subr.mxu0 0.0
        %484 = vmatpush1.msra.mxu0 0.0
        %485 = vmatprep.subr.mxu0 0.0
        %486 = vmatpush1.msra.mxu0 0.0
        %487 = vmatprep.subr.mxu0 0.0
        %488 = vmatpush1.msra.mxu0 0.0
        %489 = vmatprep.subr.mxu0 0.0
        %490 = vmatpush1.msra.mxu0 0.0
        %491 = vmatprep.subr.mxu0 0.0
        %492 = vmatpush1.msra.mxu0 0.0
        %493 = vmatprep.subr.mxu0 0.0
        %494 = vmatpush1.msra.mxu0 0.0
        %495 = vmatprep.subr.mxu0 0.0
        %496 = vmatpush1.msra.mxu0 0.0
        %497 = vmatprep.subr.mxu0 0.0
        %498 = vmatpush1.msra.mxu0 0.0
        %499 = vmatprep.subr.mxu0 0.0
        %500 = vmatpush1.msra.mxu0 0.0
        %501 = vmatprep.subr.mxu0 0.0
        %502 = vmatpush1.msra.mxu0 0.0
        %503 = vmatprep.subr.mxu0 0.0
        %504 = vmatpush1.msra.mxu0 %v477
        %505 = vmatprep.subr.mxu0 0.0
        %506 = vmatpush1.msra.mxu0 %v476
        %507 = vmatprep.subr.mxu0 0.0
        %508 = vmatpush1.msra.mxu0 %v475
        %509 = vmatprep.subr.mxu0 0.0
        %510 = vmatpush1.msra.mxu0 %v474
        %511 = vmatprep.subr.mxu0 0.0
        %512 = vmatpush2.msra.mxu0 0.0
        %513 = vmatprep.subr.mxu0 0.0
        %514 = vmatpush2.msra.mxu0 0.0
        %515 = vmatprep.subr.mxu0 0.0
        %516 = vmatpush2.msra.mxu0 0.0
        %517 = vmatprep.subr.mxu0 0.0
        %518 = vmatpush2.msra.mxu0 0.0
        %519 = vmatprep.subr.mxu0 0.0
        %520 = vmatpush2.msra.mxu0 0.0
        %521 = vmatprep.subr.mxu0 0.0
        %522 = vmatpush2.msra.mxu0 0.0
        %523 = vmatprep.subr.mxu0 0.0
        %524 = vmatpush2.msra.mxu0 0.0
        %525 = vmatprep.subr.mxu0 0.0
        %526 = vmatpush2.msra.mxu0 0.0
        %527 = vmatprep.subr.mxu0 0.0
        %528 = vmatpush2.msra.mxu0 0.0
        %529 = vmatprep.subr.mxu0 0.0
        %530 = vmatpush2.msra.mxu0 0.0
        %531 = vmatprep.subr.mxu0 0.0
        %532 = vmatpush2.msra.mxu0 0.0
        %533 = vmatprep.subr.mxu0 0.0
        %534 = vmatpush2.msra.mxu0 0.0
        %535 = vmatprep.subr.mxu0 0.0
        %536 = vmatpush2.msra.mxu0 0.0
        %537 = vmatprep.subr.mxu0 0.0
        %538 = vmatpush2.msra.mxu0 0.0
        %539 = vmatprep.subr.mxu0 0.0
        %540 = vmatpush2.msra.mxu0 0.0
        %541 = vmatprep.subr.mxu0 0.0
        %542 = vmatpush2.msra.mxu0 0.0
        %543 = vmatprep.mubr.f32.mxu0 0.0
        %544 = vmatmul.mubr.f32.gmra.mxu0 %v387
        %v545 = vpop.f32.mrf.mxu0
        %v546 = vadd.f32 0.0, %v545
        %v547 = vpop.f32.mrf.mxu0
        %548 = vdwg.mxu0
        %v549 = vlaneseq
        %v550 = vshrl.u32 %v549, 7
        %v551 = vsub.s32 0, %v550
        %v552 = vrot.slane %v478, %v551
        %v553 = vadd.f32 %v385, %v552
        %v554 = vmul.f32 %v546, 2.0
        %v555 = vsub.f32 %v553, %v554
        %v556 = vmax.f32 %v555, 0.0
        %v557 = vrsqrt.pop %v556
        %v558 = vmul.f32 %v556, %v557
        %vm559 = vcmp.eq.f32.partialorder %v556, inf
        %v560 = vsel %vm559, %v556, %v558
        %vm561 = vcmp.eq.f32.partialorder %v556, 0.0
        %v562 = vand.u32 %v556, 2147483648
        %v563 = vsel %vm561, %v562, %v560
        %565 = vset.pattern.permute.xlu0 32
        %566 = vperm.xlu0 %565, %v376
        %v567 = vpop.permute.xlu0 %566
        %v569 = vmul.f32 %v473, %v567
        %v570 = vsub.f32 1.0, %v376
        %572 = vset.pattern.permute.xlu0 32
        %573 = vperm.xlu0 %572, %v570
        %v574 = vpop.permute.xlu0 %573
        %v576 = vmul.f32 %v563, %v574
        %v577 = vadd.f32 %v569, %v576
        %v578 = vlaneseq
        %v579 = vand.u32 %v578, 127
        %v581 = vand.u32 %v577, 4294967280
        %v582 = vor.u32 %v581, %v579
        %vm583 = vcmask 130048
        %v584 = vsel %vm583, %v582, 2147483647
        %v585 = vand.u32 %v584, 65535
        %v586 = vshra.s32 %v584, 16
        %v587 = vcvt.s32.f32 %v585
        %v588 = vcvt.s32.f32 %v586
        %589 = vmin.xlane.f32.xlu0 %v588
        %v590 = vpop.xlane.xlu0 %589
        %vm591 = vcmp.eq.f32.partialorder %v588, %v590
        %v592 = vsel %vm591, %v587, inf
        %593 = vmin.xlane.f32.xlu0 %v592
        %v594 = vpop.xlane.xlu0 %593
        %v595 = vcvt.f32.s32 %v594
        %v596 = vcvt.f32.s32 %v590
        %v597 = vshll.u32 %v596, 16
        %v598 = vadd.s32 %v597, %v595
        %v599 = vand.u32 %v598, 4294967280
        %vm600 = vcmp.eq.s32.totalorder %v579, 0
        %v601 = vsel %vm600, %v599, 0
        %vm602 = vcmp.eq.s32.totalorder %v579, 5
        %v603 = vand.u32 %v598, 15
        %v604 = vsel %vm602, %v603, %v601
        %vm605 = vcmp.eq.s32.totalorder %v582, %v598
        %v606 = vsel %vm605, 2147483647, %v582
        %v607 = vsel %vm583, %v606, 2147483647
        %v608 = vand.u32 %v607, 65535
        %v609 = vshra.s32 %v607, 16
        %v610 = vcvt.s32.f32 %v608
        %v611 = vcvt.s32.f32 %v609
        %612 = vmin.xlane.f32.xlu0 %v611
        %v613 = vpop.xlane.xlu0 %612
        %vm614 = vcmp.eq.f32.partialorder %v611, %v613
        %v615 = vsel %vm614, %v610, inf
        %616 = vmin.xlane.f32.xlu0 %v615
        %v617 = vpop.xlane.xlu0 %616
        %v618 = vcvt.f32.s32 %v617
        %v619 = vcvt.f32.s32 %v613
        %v620 = vshll.u32 %v619, 16
        %v621 = vadd.s32 %v620, %v618
        %v622 = vand.u32 %v621, 4294967280
        %vm623 = vcmp.eq.s32.totalorder %v579, 1
        %v624 = vsel %vm623, %v622, %v604
        %vm625 = vcmp.eq.s32.totalorder %v579, 6
        %v626 = vand.u32 %v621, 15
        %v627 = vsel %vm625, %v626, %v624
        %vm628 = vcmp.eq.s32.totalorder %v606, %v621
        %v629 = vsel %vm628, 2147483647, %v606
        %v630 = vsel %vm583, %v629, 2147483647
        %v631 = vand.u32 %v630, 65535
        %v632 = vshra.s32 %v630, 16
        %v633 = vcvt.s32.f32 %v631
        %v634 = vcvt.s32.f32 %v632
        %635 = vmin.xlane.f32.xlu0 %v634
        %v636 = vpop.xlane.xlu0 %635
        %vm637 = vcmp.eq.f32.partialorder %v634, %v636
        %v638 = vsel %vm637, %v633, inf
        %639 = vmin.xlane.f32.xlu0 %v638
        %v640 = vpop.xlane.xlu0 %639
        %v641 = vcvt.f32.s32 %v640
        %v642 = vcvt.f32.s32 %v636
        %v643 = vshll.u32 %v642, 16
        %v644 = vadd.s32 %v643, %v641
        %v645 = vand.u32 %v644, 4294967280
        %vm646 = vcmp.eq.s32.totalorder %v579, 2
        %v647 = vsel %vm646, %v645, %v627
        %vm648 = vcmp.eq.s32.totalorder %v579, 7
        %v649 = vand.u32 %v644, 15
        %v650 = vsel %vm648, %v649, %v647
        %vm651 = vcmp.eq.s32.totalorder %v629, %v644
        %v652 = vsel %vm651, 2147483647, %v629
        %v653 = vsel %vm583, %v652, 2147483647
        %v654 = vand.u32 %v653, 65535
        %v655 = vshra.s32 %v653, 16
        %v656 = vcvt.s32.f32 %v654
        %v657 = vcvt.s32.f32 %v655
        %658 = vmin.xlane.f32.xlu0 %v657
        %v659 = vpop.xlane.xlu0 %658
        %vm660 = vcmp.eq.f32.partialorder %v657, %v659
        %v661 = vsel %vm660, %v656, inf
        %662 = vmin.xlane.f32.xlu0 %v661
        %v663 = vpop.xlane.xlu0 %662
        %v664 = vcvt.f32.s32 %v663
        %v665 = vcvt.f32.s32 %v659
        %v666 = vshll.u32 %v665, 16
        %v667 = vadd.s32 %v666, %v664
        %v668 = vand.u32 %v667, 4294967280
        %vm669 = vcmp.eq.s32.totalorder %v579, 3
        %v670 = vsel %vm669, %v668, %v650
        %vm671 = vcmp.eq.s32.totalorder %v579, 8
        %v672 = vand.u32 %v667, 15
        %v673 = vsel %vm671, %v672, %v670
        %vm674 = vcmp.eq.s32.totalorder %v652, %v667
        %v675 = vsel %vm674, 2147483647, %v652
        %v676 = vsel %vm583, %v675, 2147483647
        %v677 = vand.u32 %v676, 65535
        %v678 = vshra.s32 %v676, 16
        %v679 = vcvt.s32.f32 %v677
        %v680 = vcvt.s32.f32 %v678
        %681 = vmin.xlane.f32.xlu0 %v680
        %v682 = vpop.xlane.xlu0 %681
        %vm683 = vcmp.eq.f32.partialorder %v680, %v682
        %v684 = vsel %vm683, %v679, inf
        %685 = vmin.xlane.f32.xlu0 %v684
        %v686 = vpop.xlane.xlu0 %685
        %v687 = vcvt.f32.s32 %v686
        %v688 = vcvt.f32.s32 %v682
        %v689 = vshll.u32 %v688, 16
        %v690 = vadd.s32 %v689, %v687
        %v691 = vand.u32 %v690, 4294967280
        %vm692 = vcmp.eq.s32.totalorder %v579, 4
        %v693 = vsel %vm692, %v691, %v673
        %vm694 = vcmp.eq.s32.totalorder %v579, 9
        %v695 = vand.u32 %v690, 15
        %v696 = vsel %vm694, %v695, %v693
        %697 = vst [vmem:[%s267] sm:$0xff] %v696
        %s698 = sand.u32 %s163, 1
        %s699 = scalar_lea.sflag [#allocation3], %s698
        %s700 = sand.u32 %s163, 1
        %s701 = smul.addr %s700, 8
        %s702 = scalar_lea.vmem [#allocation2], %s701
        // Predicated region
        $region41: #{tpu_custom_call.1} parent=39 // pred_check
          %p703 = pneg %p173
        $region42: #{tpu_custom_call.1} parent=39 // pred_check_branch
          %705 = sbr.rel (%p703) target = $region44
        $region43: #{tpu_custom_call.1} parent=39 // pred_region
          %s707 = ssub.s32 128, 128
          %708 = vsyncadd %s699, %s707
          %s709 = sadd.s32 %s24, %s23
          %s710 = smul.addr %s709, 128
          %s711 = scalar_lea.hbm %s5, %s710
          %s713 = sshll.u32 %s702, 4
          %s714 = int_to_ptr.vmem [resolvable:$true] %s713
          %716 = dma.vmem_to_hbm [thread:$0]  %s714, 128, %s711, %s699
        $region44: #{tpu_custom_call.1} parent=39 // pred_fallthru
          _
      $region40: #{tpu_custom_call.1} parent=5 // pred_fallthru
        _
      %p717 = scmp.le.s32.totalorder 2, %s14
      // Predicated region
      $region45: #{tpu_custom_call.1} parent=5 // pred_check
        %p718 = pneg %p717
      $region46: #{tpu_custom_call.1} parent=5 // pred_check_branch
        %720 = sbr.rel (%p718) target = $region48
      $region47: #{tpu_custom_call.1} parent=5 // pred_region
        %s721 = ssub.s32 %s14, 2
        // Predicated region
        $region49: #{tpu_custom_call.1} parent=47 // pred_check
          %p722 = pneg %p179
        $region50: #{tpu_custom_call.1} parent=47 // pred_check_branch
          %724 = sbr.rel (%p722) target = $region52
        $region51: #{tpu_custom_call.1} parent=47 // pred_region
          %s725 = sand.u32 %s164, 1
          %s726 = scalar_lea.sflag [#allocation3], %s725
          %s727 = sand.u32 %s164, 1
          %s728 = smul.addr %s727, 8
          %s729 = scalar_lea.vmem [#allocation2], %s728
          %730 = dma.done %s726, 128
        $region52: #{tpu_custom_call.1} parent=47 // pred_fallthru
          _
      $region48: #{tpu_custom_call.1} parent=5 // pred_fallthru
        _
    $region6: #{tpu_custom_call.1} parent=1 // loop_footer
      %s18 = sadd.s32 1, %s14
    $region7: #{tpu_custom_call.1} parent=1 // loop_footer_branch
      %13 = sbr.rel target = $region3
    $region8: #{tpu_custom_call.1} parent=1 // loop_exit
      _
    %731 = vsyncpa [#allocation3], 1
    %s732 = scalar_lea.sflag [#allocation3], 1
    %733 = vsyncpa %s732, 1

</llo_original>
